<compile_context>
chip_gen: v7x
topology: tpu7x:2x2x1
jax: 0.10.0
libtpu: 0.0.40
codegen_flags: <defaults>
</compile_context>

<pallas_src>
import functools
import math

import jax
import jax.numpy as jnp
from jax import lax
from jax.experimental import pallas as pl
from jax.experimental.pallas import tpu as pltpu

PITCH_BINS = 360
CENTS_PER_BIN = 20
WINDOW_SIZE = 1024
HOP_LENGTH = 160
BN_EPS = 0.0010000000474974513

FRAME_BLOCK = 8       # frames per conv grid step (raise for long audio / bigger chips)
ROW_TILE_MAX = 64     # row tile for the normalize and classify+decode kernels


# ----------------------------------------------------------------------------
# Pallas kernels
# ----------------------------------------------------------------------------
def _normalize_kernel(x_ref, o_ref):
    """frames -= mean; frames /= max(1e-10, unbiased std)   (per row, row-tiled)."""
    x = x_ref[...]
    w = x.shape[-1]
    mean = jnp.mean(x, axis=-1, keepdims=True)
    xc = x - mean
    var = jnp.sum(xc * xc, axis=-1, keepdims=True) / jnp.float32(w - 1)  # torch unbiased
    std = jnp.sqrt(var)
    o_ref[...] = xc / jnp.maximum(jnp.float32(1e-10), std)


def _conv_bn_pool_kernel(x_ref, w_ref, p_ref, o_ref, acc_ref):
    """Fused conv (K shifted matmuls, no im2col) + bias + ReLU + BN + (2,1) max-pool.

    grid = (frame_blocks, cin_chunks); the cin axis is the (trailing, 'arbitrary')
    reduction axis accumulated in the f32 VMEM scratch `acc_ref`.

    x_ref : (F, Lpad, cc)   f32   padded activation block, one cin-chunk
    w_ref : (K*cc, Cout)    bf16  rows ordered tap-major / channel-minor for this chunk
    p_ref : (3, Cout)       f32   rows = [conv bias, bn scale, bn shift]
    o_ref : (F*Lout/2, Cout) f32  pooled output rows = f*Lh + p
    acc   : (F*Lout, Cout)  f32
    """
    fb, _, cc = x_ref.shape
    cout = w_ref.shape[1]
    rows = acc_ref.shape[0]
    lout = rows // fb
    ktaps = w_ref.shape[0] // cc
    j = pl.program_id(1)

    @pl.when(j == 0)
    def _init():
        acc_ref[...] = jnp.zeros_like(acc_ref)

    # sum_k  x[:, k : k+Lout, :] @ W_k  (shifted matmuls; bf16 on the MXU, f32 acc)
    part = jnp.zeros((rows, cout), jnp.float32)
    for k in range(ktaps):
        xs = x_ref[:, k:k + lout, :].reshape(rows, cc).astype(jnp.bfloat16)
        wk = w_ref[k * cc:(k + 1) * cc, :]
        part = part + jnp.dot(xs, wk, preferred_element_type=jnp.float32)
    acc_ref[...] += part

    @pl.when(j == pl.num_programs(1) - 1)
    def _finalize():
        half = rows // 2
        bias = p_ref[0:1, :]
        scale = p_ref[1:2, :]
        shift = p_ref[2:3, :]
        # rows of acc are (frame, l) with l minor; the (2,1) max-pool pairs 2p / 2p+1
        even = acc_ref[pl.ds(0, half, stride=2), :]
        odd = acc_ref[pl.ds(1, half, stride=2), :]
        ye = jnp.maximum(even + bias, 0.0) * scale + shift   # relu then eval-BN affine
        yo = jnp.maximum(odd + bias, 0.0) * scale + shift
        o_ref[...] = jnp.maximum(ye, yo)                     # fused max_pool2d((2,1))


def _classify_decode_kernel(x_ref, w_ref, b_ref, cw_ref, pitch_ref, per_ref,
                            *, minidx, maxidx):
    """Fused classifier (linear + sigmoid) + frequency mask + weighted_argmax decode."""
    logits = jnp.dot(x_ref[...].astype(jnp.bfloat16), w_ref[...],
                     preferred_element_type=jnp.float32) + b_ref[...]
    probs = 1.0 / (1.0 + jnp.exp(-logits))                   # network probabilities
    r, nb = probs.shape
    bin_idx = lax.broadcasted_iota(jnp.int32, (r, nb), 1)
    neg_inf = jnp.float32(-jnp.inf)

    # probabilities[:, :minidx] = -inf ; probabilities[:, maxidx:] = -inf
    masked = jnp.where((bin_idx >= minidx) & (bin_idx < maxidx), probs, neg_inf)

    # argmax over bins (first occurrence, like torch.argmax)
    m = jnp.max(masked, axis=-1, keepdims=True)
    bins = jnp.min(jnp.where(masked == m, bin_idx, nb), axis=-1, keepdims=True)

    # window the "logits" to [bins-4, bins+5) and take sigmoid (sigmoid(-inf) == 0)
    start = jnp.maximum(0, bins - 4)
    end = jnp.minimum(nb, bins + 5)
    window = (bin_idx >= start) & (bin_idx < end)
    wlogits = jnp.where(window, masked, neg_inf)
    p = 1.0 / (1.0 + jnp.exp(-wlogits))

    wsum = jnp.sum(cw_ref[...] * p, axis=-1, keepdims=True)
    psum = jnp.sum(p, axis=-1, keepdims=True)
    cents = wsum / psum

    pitch_ref[...] = 10.0 * jnp.exp(cents * (math.log(2.0) / 1200.0))  # 10 * 2**(c/1200)
    per_ref[...] = m           # periodicity = probability at the argmax bin == row max


# ----------------------------------------------------------------------------
# Pallas wrappers
# ----------------------------------------------------------------------------
def normalize_frames(frames, rt):
    nf, w = frames.shape
    return pl.pallas_call(
        _normalize_kernel,
        out_shape=jax.ShapeDtypeStruct((nf, w), jnp.float32),
        grid=(nf // rt,),
        in_specs=[pl.BlockSpec((rt, w), lambda i: (i, 0))],
        out_specs=pl.BlockSpec((rt, w), lambda i: (i, 0)),
        compiler_params=pltpu.CompilerParams(dimension_semantics=("parallel",)),
    )(frames)


def conv_layer(x, layer, fb=FRAME_BLOCK):
    """x: (NF, Lin, Cin) f32 channel-last -> fused conv/relu/bn/pool -> (NF, Lout/2, Cout)."""
    nf, lin, cin = x.shape
    pad_lo, pad_hi = layer["pad"]
    K, cc, ncc, cout = layer["K"], layer["cc"], layer["ncc"], layer["cout"]
    assert cin == cc * ncc and nf % fb == 0
    if pad_lo or pad_hi:
        x = jnp.pad(x, ((0, 0), (pad_lo, pad_hi), (0, 0)))   # cheap: raw activation, not im2col
    lpad = lin + pad_lo + pad_hi
    lout = lpad - K + 1
    assert lout % 2 == 0
    lh = lout // 2

    y = pl.pallas_call(
        _conv_bn_pool_kernel,
        out_shape=jax.ShapeDtypeStruct((nf * lh, cout), jnp.float32),
        grid=(nf // fb, ncc),                                # reduction (cin chunks) last
        in_specs=[
            pl.BlockSpec((fb, lpad, cc), lambda i, j: (i, 0, j)),
            pl.BlockSpec((K * cc, cout), lambda i, j: (j, 0)),
            pl.BlockSpec((3, cout), lambda i, j: (0, 0)),
        ],
        out_specs=pl.BlockSpec((fb * lh, cout), lambda i, j: (i, 0)),
        scratch_shapes=[pltpu.VMEM((fb * lout, cout), jnp.float32)],
        compiler_params=pltpu.CompilerParams(
            dimension_semantics=("parallel", "arbitrary")),
    )(x, layer["w"], layer["p"])
    return y.reshape(nf, lh, cout)


def classify_and_decode(x, w_lin, b_lin, cents_w, minidx, maxidx, rt):
    nf, kdim = x.shape
    nb = w_lin.shape[1]
    kern = functools.partial(_classify_decode_kernel, minidx=minidx, maxidx=maxidx)
    pitch, per = pl.pallas_call(
        kern,
        out_shape=(jax.ShapeDtypeStruct((nf, 1), jnp.float32),
                   jax.ShapeDtypeStruct((nf, 1), jnp.float32)),
        grid=(nf // rt,),
        in_specs=[pl.BlockSpec((rt, kdim), lambda i: (i, 0)),
                  pl.BlockSpec((kdim, nb), lambda i: (0, 0)),
                  pl.BlockSpec((1, nb), lambda i: (0, 0)),
                  pl.BlockSpec((1, nb), lambda i: (0, 0))],
        out_specs=(pl.BlockSpec((rt, 1), lambda i: (i, 0)),
                   pl.BlockSpec((rt, 1), lambda i: (i, 0))),
        compiler_params=pltpu.CompilerParams(dimension_semantics=("parallel",)),
    )(x, w_lin, b_lin, cents_w)
    return pitch[:, 0], per[:, 0]


# ----------------------------------------------------------------------------
# Crepe model (synthetic deterministic weights, torchcrepe architecture)
# ----------------------------------------------------------------------------
def init_crepe_params(model="tiny", seed=0):
    # TODO(synk): real .pth checkpoint loading has no in-script equivalent; weights are
    # synthetic but layouts/shapes follow torchcrepe exactly.
    if model == "full":
        in_ch = [1, 1024, 128, 128, 128, 256]
        out_ch = [1024, 128, 128, 128, 256, 512]
        in_features = 2048
    else:  # 'tiny'
        in_ch = [1, 128, 16, 16, 16, 32]
        out_ch = [128, 16, 16, 16, 32, 64]
        in_features = 256
    ksizes = [512] + [64] * 5
    strides = [4] + [1] * 5
    pads = [(254, 254)] + [(31, 32)] * 5

    key = jax.random.PRNGKey(seed)
    layers = []
    for li in range(6):
        k1 = jax.random.fold_in(key, li)
        cin, cout, K = in_ch[li], out_ch[li], ksizes[li]
        w = jax.random.normal(k1, (cout, cin, K), dtype=jnp.float32) / math.sqrt(cin * K)
        bias = 0.01 * jax.random.normal(jax.random.fold_in(k1, 1), (cout,), jnp.float32)
        gamma = 1.0 + 0.05 * jax.random.normal(jax.random.fold_in(k1, 2), (cout,), jnp.float32)
        beta = 0.05 * jax.random.normal(jax.random.fold_in(k1, 3), (cout,), jnp.float32)
        rmean = 0.05 * jax.random.normal(jax.random.fold_in(k1, 4), (cout,), jnp.float32)
        rvar = 1.0 + 0.05 * jnp.abs(jax.random.normal(jax.random.fold_in(k1, 5), (cout,), jnp.float32))
        a = gamma / jnp.sqrt(rvar + BN_EPS)         # eval-mode BN folded to affine
        b = beta - rmean * a

        fold = None
        if li == 0:
            # stride-4 conv on the flat frame == stride-1 conv on the frame folded to
            # (L/4, 4) channels; zero-pad channels 4 -> 8 for sublane-aligned contraction.
            fold = strides[0]                                          # 4
            keff = K // fold                                           # 128
            w_eff = jnp.transpose(w.reshape(cout, keff, fold), (0, 2, 1))   # [o, r, q]
            w_eff = jnp.pad(w_eff, ((0, 0), (0, 8 - fold), (0, 0)))         # cin_eff = 8
            cin_eff, k_eff, pad_eff = 8, keff, (0, 0)
        else:
            w_eff, cin_eff, k_eff, pad_eff = w, cin, K, pads[li]

        # cin chunking keeps weight/activation blocks VMEM-bounded for the 'full' config
        cc = cin_eff if cin_eff <= 128 else 128
        assert cin_eff % cc == 0
        ncc = cin_eff // cc
        # weight rows grouped [cin-chunk][tap][channel-in-chunk]; matches in-kernel slices
        w4 = jnp.transpose(w_eff.reshape(cout, ncc, cc, k_eff), (1, 3, 2, 0))
        w2 = w4.reshape(ncc * k_eff * cc, cout).astype(jnp.bfloat16)
        p = jnp.stack([bias, a, b], axis=0)                            # (3, cout) f32

        layers.append(dict(w=w2, p=p, K=k_eff, cc=cc, ncc=ncc, cout=cout, pad=pad_eff,
                           frame_pad=pads[0] if li == 0 else None, fold=fold))

    kc = jax.random.fold_in(key, 100)
    w_lin = (jax.random.normal(kc, (in_features, PITCH_BINS), jnp.float32)
             / math.sqrt(in_features)).astype(jnp.bfloat16)
    b_lin = 0.01 * jax.random.normal(jax.random.fold_in(kc, 1), (PITCH_BINS,), jnp.float32)
    return layers, w_lin, b_lin.reshape(1, PITCH_BINS)


def crepe_forward(frames, layers, fb):
    """frames: (NFp, 1024) normalized -> (NFp, in_features) flattened conv features."""
    nfp = frames.shape[0]
    l0 = layers[0]
    plo, phi = l0["frame_pad"]
    fold = l0["fold"]
    x = jnp.pad(frames, ((0, 0), (plo, phi)))                 # (NFp, 1532)
    lt = x.shape[1] // fold
    assert lt * fold == x.shape[1]
    x = x.reshape(nfp, lt, fold)                              # stride-4 -> stride-1 fold
    x = jnp.pad(x, ((0, 0), (0, 0), (0, l0["cc"] - fold)))    # cin 4 -> 8 (zero channels)
    for layer in layers:
        x = conv_layer(x, layer, fb)                          # (NFp, L/2, Cout)
    # == torch permute(0,2,1,3).reshape(-1, in_features): (l-major, c-minor) flatten
    return x.reshape(nfp, -1)


# ----------------------------------------------------------------------------
# TorchCrepe2 forward glue
# ----------------------------------------------------------------------------
def frequency_to_bins_scalar(freq, quantize):
    cents = 1200.0 * math.log2(freq / 10.0)
    return int(quantize((cents - 1997.379408437619) / CENTS_PER_BIN))


def weighted_argmax_weights(key):
    """weights = bins_to_cents(arange(360)) with dither noise (torch.rand -> jax.random)."""
    cents = CENTS_PER_BIN * jnp.arange(PITCH_BINS, dtype=jnp.float32) + 1997.379408437619
    c, loc, scale = 0.5, -float(CENTS_PER_BIN), 2.0 * CENTS_PER_BIN
    u = jax.random.uniform(key, (PITCH_BINS,), dtype=jnp.float32)
    f = jnp.where(u < c, (c - u) / (scale / 2), (u - c) / (scale / 2))
    noise = 2 * scale * (1 - jnp.abs(f)) ** 0.5 + loc
    noise = jnp.where(u >= c, 2 * (scale - noise), noise)
    return cents + noise


def torch_crepe2_forward(audio, f0_min, f0_max, params, dither_key, fb=FRAME_BLOCK):
    layers, w_lin, b_lin = params
    B, _ = audio.shape
    pad = WINDOW_SIZE // 2
    padded = jnp.pad(audio.astype(jnp.float32), ((0, 0), (pad, pad)))
    T = (padded.shape[1] - WINDOW_SIZE) // HOP_LENGTH + 1
    idx = jnp.arange(T)[:, None] * HOP_LENGTH + jnp.arange(WINDOW_SIZE)[None, :]
    frames = padded[:, idx].reshape(B * T, WINDOW_SIZE)       # unfold (glue)

    nf = B * T
    nfp = -(-nf // fb) * fb                                   # pad raw frame rows only
    if nfp > ROW_TILE_MAX:
        nfp = -(-nfp // ROW_TILE_MAX) * ROW_TILE_MAX
    rt = min(nfp, ROW_TILE_MAX)
    if nfp != nf:
        frames = jnp.pad(frames, ((0, nfp - nf), (0, 0)))

    frames = normalize_frames(frames, rt)                     # Pallas: per-frame normalize
    feats = crepe_forward(frames, layers, fb)                 # Pallas fused conv stack
    assert feats.shape[1] == w_lin.shape[0]

    minidx = frequency_to_bins_scalar(f0_min, math.floor)
    maxidx = frequency_to_bins_scalar(f0_max, math.ceil)
    maxidx = max(maxidx, minidx + 1)                          # guard degenerate f0 range
    cents_w = weighted_argmax_weights(dither_key).reshape(1, PITCH_BINS)

    pitch, per = classify_and_decode(feats, w_lin, b_lin, cents_w, minidx, maxidx, rt)
    return pitch[:nf].reshape(B, T), per[:nf].reshape(B, T)


# ----------------------------------------------------------------------------
if __name__ == "__main__":
    key = jax.random.PRNGKey(0)
    B = 2
    S = 1600   # 100 ms @ 16 kHz  ->  T = S // 160 + 1 = 11 frames per batch element
    audio = jax.random.normal(key, (B, S), dtype=jnp.float32)

    params = init_crepe_params(model="tiny", seed=0)   # 'tiny' keeps the demo shapes small
    pitch, periodicity = torch_crepe2_forward(audio, 50, 1100, params,
                                              dither_key=jax.random.fold_in(key, 7))
    jax.block_until_ready((pitch, periodicity))

    T = S // HOP_LENGTH + 1
    assert pitch.shape == (B, T) and pitch.dtype == jnp.float32
    assert periodicity.shape == (B, T) and periodicity.dtype == jnp.float32
    assert bool(jnp.all(jnp.isfinite(pitch))) and bool(jnp.all(periodicity > 0))
    print("KERNEL_OK")
</pallas_src>

<mosaic_0001>
module attributes {stable_mosaic.version = 11 : i64} {
  func.func @_normalize_kernel(%arg0: i32, %arg1: memref<24x1024xf32, #tpu.memory_space<vmem>>, %arg2: memref<24x1024xf32, #tpu.memory_space<vmem>>) attributes {dimension_semantics = [#tpu.dimension_semantics<parallel>], iteration_bounds = array<i64: 1>, scalar_prefetch = 0 : i64, scratch_operands = 0 : i64, tpu.core_type = #tpu.core_type<tc>, window_params = [{transform_indices = @transform_0, window_bounds = array<i64: 24, 1024>}, {transform_indices = @transform_1, window_bounds = array<i64: 24, 1024>}]} {
    %c0 = arith.constant 0 : index
    %c0_0 = arith.constant 0 : index
    %0 = vector.load %arg1[%c0, %c0_0] : memref<24x1024xf32, #tpu.memory_space<vmem>>, vector<24x1024xf32>
    %cst = arith.constant dense<0.000000e+00> : vector<24xf32>
    %1 = vector.multi_reduction <add>, %0, %cst [1] : vector<24x1024xf32> to vector<24xf32>
    %2 = vector.shape_cast %1 : vector<24xf32> to vector<24x1xf32>
    %cst_1 = arith.constant 1.024000e+03 : f32
    %3 = vector.broadcast %cst_1 : f32 to vector<24x1xf32>
    %4 = arith.divf %2, %3 : vector<24x1xf32>
    %5 = vector.broadcast %4 : vector<24x1xf32> to vector<24x1024xf32>
    %6 = arith.subf %0, %5 : vector<24x1024xf32>
    %7 = arith.mulf %6, %6 : vector<24x1024xf32>
    %cst_2 = arith.constant dense<0.000000e+00> : vector<24xf32>
    %8 = vector.multi_reduction <add>, %7, %cst_2 [1] : vector<24x1024xf32> to vector<24xf32>
    %9 = vector.shape_cast %8 : vector<24xf32> to vector<24x1xf32>
    %cst_3 = arith.constant 1.023000e+03 : f32
    %10 = vector.broadcast %cst_3 : f32 to vector<24x1xf32>
    %11 = arith.divf %9, %10 : vector<24x1xf32>
    %12 = math.sqrt %11 : vector<24x1xf32>
    %cst_4 = arith.constant 1.000000e-10 : f32
    %13 = vector.broadcast %cst_4 : f32 to vector<24x1xf32>
    %14 = arith.maximumf %13, %12 : vector<24x1xf32>
    %15 = vector.broadcast %14 : vector<24x1xf32> to vector<24x1024xf32>
    %16 = arith.divf %6, %15 : vector<24x1024xf32>
    %c0_5 = arith.constant 0 : index
    %c0_6 = arith.constant 0 : index
    %17 = vector.load %arg2[%c0_5, %c0_6] : memref<24x1024xf32, #tpu.memory_space<vmem>>, vector<24x1024xf32>
    tpu.vector_store %arg2[%c0_5, %c0_6], %16 {strides = array<i32>} : memref<24x1024xf32, #tpu.memory_space<vmem>>, vector<24x1024xf32>,
    return
  }
  func.func @transform_0(%arg0: i32) -> (i32, i32) {
    %c0_i32 = arith.constant 0 : i32
    %c0_i32_0 = arith.constant 0 : i32
    return %arg0, %c0_i32 : i32, i32
  }
  func.func @transform_1(%arg0: i32) -> (i32, i32) {
    %c0_i32 = arith.constant 0 : i32
    %c0_i32_0 = arith.constant 0 : i32
    return %arg0, %c0_i32 : i32, i32
  }
}

</mosaic_0001>

<llo_original>
// kernel: tpu_custom_call.1
$region0: #{tpu_custom_call.1}
  #allocation0 [shape = 'u32[]', space=smem, size = 0x4, offset = 0x4, fixed_abs, tag = 'smem constant byte address 0x4 - core index']
  #allocation1 [shape = 'u32[144,128]{1,0:T(1,128)}', space=vmem, size = 0x12000, scoped, tag = 'internal scratch']
  %s0 = inlined_call_operand.hbm [shape: f32[24,1024], index: 0, kind: input, shape index: {}]
  %s1 = inlined_call_operand.hbm [shape: f32[24,1024], index: 1, kind: output, shape index: {}]
  %s2 = sld [smem:[#allocation0]]
  $region18: #{tpu_custom_call.1} parent=0
    _
  %s4 = ssub.s32 1, %s2
  %s5 = scalar_select 0, %s4, %s2
  $region1: #{tpu_custom_call.1} parent=0
    #allocation2 [shape = 'u8[98304]{0}', space=vmem, size = 0x18000, scoped, tag = 'input window, operand 0, single buffered']
    #allocation3 [shape = 's32[1]{0}', space=sflag, size = 0x4, scoped, tag = 'scoped memory for tpu_custom_call.1']
    #allocation4 [shape = 's32[1]{0}', space=sflag, size = 0x4, scoped, tag = 'scoped memory for tpu_custom_call.1']
    #allocation5 [shape = 'u8[98304]{0}', space=vmem, size = 0x18000, scoped, tag = 'output window, operand 0, single buffered']
    %6 = vsyncpa [#allocation3], 0
    %7 = vsyncpa [#allocation4], 0
    // Predicated region
    $region2: #{tpu_custom_call.1} parent=1 // pred_check
      _
    $region3: #{tpu_custom_call.1} parent=1 // pred_check_branch
      %9 = sbr.rel (0) target = $region5
    $region4: #{tpu_custom_call.1} parent=1 // pred_region
      %s11 = ssub.s32 3072, 3072
      %12 = vsyncadd [#allocation3], %s11
      %s13 = sshll.u32 [#allocation2], 4
      %s14 = int_to_ptr.vmem [resolvable:$true] %s13
      %19 = dma.hbm_to_vmem [thread:$0]  %s0, 3072, %s14, [#allocation3], 1024, 1024, 64
    $region5: #{tpu_custom_call.1} parent=1 // pred_fallthru
      _
    // Predicated region
    $region6: #{tpu_custom_call.1} parent=1 // pred_check
      _
    $region7: #{tpu_custom_call.1} parent=1 // pred_check_branch
      %21 = sbr.rel (0) target = $region9
    $region8: #{tpu_custom_call.1} parent=1 // pred_region
      %22 = dma.done [#allocation3], 3072
    $region9: #{tpu_custom_call.1} parent=1 // pred_fallthru
      _
    %v23 = vld [vmem:[#allocation2] sm:$0xff]
    %v24 = vld [vmem:[#allocation2 + $0x8] sm:$0xff]
    %v25 = vld [vmem:[#allocation2 + $0x10] sm:$0xff]
    %v26 = vld [vmem:[#allocation2 + $0x18] sm:$0xff]
    %v27 = vld [vmem:[#allocation2 + $0x20] sm:$0xff]
    %v28 = vld [vmem:[#allocation2 + $0x28] sm:$0xff]
    %v29 = vld [vmem:[#allocation2 + $0x30] sm:$0xff]
    %v30 = vld [vmem:[#allocation2 + $0x38] sm:$0xff]
    %v31 = vld [vmem:[#allocation2 + $0x40] sm:$0xff]
    %v32 = vld [vmem:[#allocation2 + $0x48] sm:$0xff]
    %v33 = vld [vmem:[#allocation2 + $0x50] sm:$0xff]
    %v34 = vld [vmem:[#allocation2 + $0x58] sm:$0xff]
    %v35 = vld [vmem:[#allocation2 + $0x60] sm:$0xff]
    %v36 = vld [vmem:[#allocation2 + $0x68] sm:$0xff]
    %v37 = vld [vmem:[#allocation2 + $0x70] sm:$0xff]
    %v38 = vld [vmem:[#allocation2 + $0x78] sm:$0xff]
    %v39 = vld [vmem:[#allocation2 + $0x80] sm:$0xff]
    %v40 = vld [vmem:[#allocation2 + $0x88] sm:$0xff]
    %v41 = vld [vmem:[#allocation2 + $0x90] sm:$0xff]
    %v42 = vld [vmem:[#allocation2 + $0x98] sm:$0xff]
    %v43 = vld [vmem:[#allocation2 + $0xa0] sm:$0xff]
    %v44 = vld [vmem:[#allocation2 + $0xa8] sm:$0xff]
    %v45 = vld [vmem:[#allocation2 + $0xb0] sm:$0xff]
    %v46 = vld [vmem:[#allocation2 + $0xb8] sm:$0xff]
    %v47 = vadd.f32 %v23, %v24
    %v48 = vadd.f32 %v47, %v25
    %v49 = vadd.f32 %v48, %v26
    %v50 = vadd.f32 %v49, %v27
    %v51 = vadd.f32 %v50, %v28
    %v52 = vadd.f32 %v51, %v29
    %v53 = vadd.f32 %v52, %v30
    %54 = vadd.xlane.f32.xlu0 %v53
    %v55 = vpop.xlane.xlu0 %54
    %v56 = vadd.f32 %v31, %v32
    %v57 = vadd.f32 %v56, %v33
    %v58 = vadd.f32 %v57, %v34
    %v59 = vadd.f32 %v58, %v35
    %v60 = vadd.f32 %v59, %v36
    %v61 = vadd.f32 %v60, %v37
    %v62 = vadd.f32 %v61, %v38
    %63 = vadd.xlane.f32.xlu0 %v62
    %v64 = vpop.xlane.xlu0 %63
    %v65 = vadd.f32 %v39, %v40
    %v66 = vadd.f32 %v65, %v41
    %v67 = vadd.f32 %v66, %v42
    %v68 = vadd.f32 %v67, %v43
    %v69 = vadd.f32 %v68, %v44
    %v70 = vadd.f32 %v69, %v45
    %v71 = vadd.f32 %v70, %v46
    %72 = vadd.xlane.f32.xlu0 %v71
    %v73 = vpop.xlane.xlu0 %72
    %v74 = vrcp.pop 1024.0
    %v75 = vmul.f32 %v55, %v74
    %v76 = vmul.f32 %v64, %v74
    %v77 = vmul.f32 %v73, %v74
    %v78 = vsub.f32 %v23, %v75
    %v79 = vsub.f32 %v24, %v75
    %v80 = vsub.f32 %v25, %v75
    %v81 = vsub.f32 %v26, %v75
    %v82 = vsub.f32 %v27, %v75
    %v83 = vsub.f32 %v28, %v75
    %v84 = vsub.f32 %v29, %v75
    %v85 = vsub.f32 %v30, %v75
    %v86 = vsub.f32 %v31, %v76
    %v87 = vsub.f32 %v32, %v76
    %v88 = vsub.f32 %v33, %v76
    %v89 = vsub.f32 %v34, %v76
    %v90 = vsub.f32 %v35, %v76
    %v91 = vsub.f32 %v36, %v76
    %v92 = vsub.f32 %v37, %v76
    %v93 = vsub.f32 %v38, %v76
    %v94 = vsub.f32 %v39, %v77
    %v95 = vsub.f32 %v40, %v77
    %v96 = vsub.f32 %v41, %v77
    %v97 = vsub.f32 %v42, %v77
    %v98 = vsub.f32 %v43, %v77
    %v99 = vsub.f32 %v44, %v77
    %v100 = vsub.f32 %v45, %v77
    %v101 = vsub.f32 %v46, %v77
    %v102 = vmul.f32 %v78, %v78
    %v103 = vmul.f32 %v79, %v79
    %v104 = vmul.f32 %v80, %v80
    %v105 = vmul.f32 %v81, %v81
    %v106 = vmul.f32 %v82, %v82
    %v107 = vmul.f32 %v83, %v83
    %v108 = vmul.f32 %v84, %v84
    %v109 = vmul.f32 %v85, %v85
    %v110 = vmul.f32 %v86, %v86
    %v111 = vmul.f32 %v87, %v87
    %v112 = vmul.f32 %v88, %v88
    %v113 = vmul.f32 %v89, %v89
    %v114 = vmul.f32 %v90, %v90
    %v115 = vmul.f32 %v91, %v91
    %v116 = vmul.f32 %v92, %v92
    %v117 = vmul.f32 %v93, %v93
    %v118 = vmul.f32 %v94, %v94
    %v119 = vmul.f32 %v95, %v95
    %v120 = vmul.f32 %v96, %v96
    %v121 = vmul.f32 %v97, %v97
    %v122 = vmul.f32 %v98, %v98
    %v123 = vmul.f32 %v99, %v99
    %v124 = vmul.f32 %v100, %v100
    %v125 = vmul.f32 %v101, %v101
    %v126 = vadd.f32 %v102, %v103
    %v127 = vadd.f32 %v126, %v104
    %v128 = vadd.f32 %v127, %v105
    %v129 = vadd.f32 %v128, %v106
    %v130 = vadd.f32 %v129, %v107
    %v131 = vadd.f32 %v130, %v108
    %v132 = vadd.f32 %v131, %v109
    %133 = vadd.xlane.f32.xlu0 %v132
    %v134 = vpop.xlane.xlu0 %133
    %v135 = vadd.f32 %v110, %v111
    %v136 = vadd.f32 %v135, %v112
    %v137 = vadd.f32 %v136, %v113
    %v138 = vadd.f32 %v137, %v114
    %v139 = vadd.f32 %v138, %v115
    %v140 = vadd.f32 %v139, %v116
    %v141 = vadd.f32 %v140, %v117
    %142 = vadd.xlane.f32.xlu0 %v141
    %v143 = vpop.xlane.xlu0 %142
    %v144 = vadd.f32 %v118, %v119
    %v145 = vadd.f32 %v144, %v120
    %v146 = vadd.f32 %v145, %v121
    %v147 = vadd.f32 %v146, %v122
    %v148 = vadd.f32 %v147, %v123
    %v149 = vadd.f32 %v148, %v124
    %v150 = vadd.f32 %v149, %v125
    %151 = vadd.xlane.f32.xlu0 %v150
    %v152 = vpop.xlane.xlu0 %151
    %v153 = vrcp.pop 1023.0
    %v154 = vmul.f32 %v134, %v153
    %v155 = vmul.f32 %v143, %v153
    %v156 = vmul.f32 %v152, %v153
    %v157 = vrsqrt.pop %v154
    %v158 = vmul.f32 %v154, %v157
    %vm159 = vcmp.eq.f32.partialorder %v154, inf
    %v160 = vsel %vm159, %v154, %v158
    %vm161 = vcmp.eq.f32.partialorder %v154, 0.0
    %v162 = vand.u32 %v154, 2147483648
    %v163 = vsel %vm161, %v162, %v160
    %v164 = vrsqrt.pop %v155
    %v165 = vmul.f32 %v155, %v164
    %vm166 = vcmp.eq.f32.partialorder %v155, inf
    %v167 = vsel %vm166, %v155, %v165
    %vm168 = vcmp.eq.f32.partialorder %v155, 0.0
    %v169 = vand.u32 %v155, 2147483648
    %v170 = vsel %vm168, %v169, %v167
    %v171 = vrsqrt.pop %v156
    %v172 = vmul.f32 %v156, %v171
    %vm173 = vcmp.eq.f32.partialorder %v156, inf
    %v174 = vsel %vm173, %v156, %v172
    %vm175 = vcmp.eq.f32.partialorder %v156, 0.0
    %v176 = vand.u32 %v156, 2147483648
    %v177 = vsel %vm175, %v176, %v174
    %v178 = vmax.f32 %v163, 1e-10
    %v179 = vmax.f32 %v170, 1e-10
    %v180 = vmax.f32 %v177, 1e-10
    %v181 = vrcp.pop %v178
    %v182 = vmul.f32 %v78, %v181
    %v183 = vmul.f32 %v79, %v181
    %v184 = vmul.f32 %v80, %v181
    %v185 = vmul.f32 %v81, %v181
    %v186 = vmul.f32 %v82, %v181
    %v187 = vmul.f32 %v83, %v181
    %v188 = vmul.f32 %v84, %v181
    %v189 = vmul.f32 %v85, %v181
    %v190 = vrcp.pop %v179
    %v191 = vmul.f32 %v86, %v190
    %v192 = vmul.f32 %v87, %v190
    %v193 = vmul.f32 %v88, %v190
    %v194 = vmul.f32 %v89, %v190
    %v195 = vmul.f32 %v90, %v190
    %v196 = vmul.f32 %v91, %v190
    %v197 = vmul.f32 %v92, %v190
    %v198 = vmul.f32 %v93, %v190
    %v199 = vrcp.pop %v180
    %v200 = vmul.f32 %v94, %v199
    %v201 = vmul.f32 %v95, %v199
    %v202 = vmul.f32 %v96, %v199
    %v203 = vmul.f32 %v97, %v199
    %v204 = vmul.f32 %v98, %v199
    %v205 = vmul.f32 %v99, %v199
    %v206 = vmul.f32 %v100, %v199
    %v207 = vmul.f32 %v101, %v199
    %208 = vst [vmem:[#allocation5] sm:$0xff] %v182
    %209 = vst [vmem:[#allocation5 + $0x8] sm:$0xff] %v183
    %210 = vst [vmem:[#allocation5 + $0x10] sm:$0xff] %v184
    %211 = vst [vmem:[#allocation5 + $0x18] sm:$0xff] %v185
    %212 = vst [vmem:[#allocation5 + $0x20] sm:$0xff] %v186
    %213 = vst [vmem:[#allocation5 + $0x28] sm:$0xff] %v187
    %214 = vst [vmem:[#allocation5 + $0x30] sm:$0xff] %v188
    %215 = vst [vmem:[#allocation5 + $0x38] sm:$0xff] %v189
    %216 = vst [vmem:[#allocation5 + $0x40] sm:$0xff] %v191
    %217 = vst [vmem:[#allocation5 + $0x48] sm:$0xff] %v192
    %218 = vst [vmem:[#allocation5 + $0x50] sm:$0xff] %v193
    %219 = vst [vmem:[#allocation5 + $0x58] sm:$0xff] %v194
    %220 = vst [vmem:[#allocation5 + $0x60] sm:$0xff] %v195
    %221 = vst [vmem:[#allocation5 + $0x68] sm:$0xff] %v196
    %222 = vst [vmem:[#allocation5 + $0x70] sm:$0xff] %v197
    %223 = vst [vmem:[#allocation5 + $0x78] sm:$0xff] %v198
    %224 = vst [vmem:[#allocation5 + $0x80] sm:$0xff] %v200
    %225 = vst [vmem:[#allocation5 + $0x88] sm:$0xff] %v201
    %226 = vst [vmem:[#allocation5 + $0x90] sm:$0xff] %v202
    %227 = vst [vmem:[#allocation5 + $0x98] sm:$0xff] %v203
    %228 = vst [vmem:[#allocation5 + $0xa0] sm:$0xff] %v204
    %229 = vst [vmem:[#allocation5 + $0xa8] sm:$0xff] %v205
    %230 = vst [vmem:[#allocation5 + $0xb0] sm:$0xff] %v206
    %231 = vst [vmem:[#allocation5 + $0xb8] sm:$0xff] %v207
    // Predicated region
    $region10: #{tpu_custom_call.1} parent=1 // pred_check
      _
    $region11: #{tpu_custom_call.1} parent=1 // pred_check_branch
      %233 = sbr.rel (0) target = $region13
    $region12: #{tpu_custom_call.1} parent=1 // pred_region
      %s235 = ssub.s32 3072, 3072
      %236 = vsyncadd [#allocation4], %s235
      %s237 = sshll.u32 [#allocation5], 4
      %s238 = int_to_ptr.vmem [resolvable:$true] %s237
      %243 = dma.vmem_to_hbm [thread:$0]  %s238, 3072, %s1, [#allocation4], 1024, 1024, 64
    $region13: #{tpu_custom_call.1} parent=1 // pred_fallthru
      _
    // Predicated region
    $region14: #{tpu_custom_call.1} parent=1 // pred_check
      _
    $region15: #{tpu_custom_call.1} parent=1 // pred_check_branch
      %245 = sbr.rel (0) target = $region17
    $region16: #{tpu_custom_call.1} parent=1 // pred_region
      %246 = dma.done [#allocation4], 3072
    $region17: #{tpu_custom_call.1} parent=1 // pred_fallthru
      _
    %247 = vsyncpa [#allocation3], 1
    %248 = vsyncpa [#allocation4], 1

</llo_original>
